<compile_context>
chip_gen: v6e
topology: v6e:2x2x1
jax: 0.10.0
libtpu: 0.0.40
codegen_flags: <defaults>
</compile_context>

<pallas_src>
import math
import functools

import jax
import jax.numpy as jnp
from jax.experimental import pallas as pl
from jax.experimental.pallas import tpu as pltpu


# MXU operand dtype for the conv matmul.  Keep f32 to match the reference
# numerics; set to jnp.bfloat16 on v6e/v7x to halve conv input DMA bytes
# (accumulation is always f32 via preferred_element_type).
MXU_DTYPE = jnp.float32

_CONV_VMEM_BUDGET = 14 << 20          # per-step working-set target (bytes)
_VMEM_LIMIT = 48 * 1024 * 1024        # explicit scoped-VMEM limit (safe on v5e/v6e/v7x)


def _round_up(x, m):
    return (x + m - 1) // m * m


# ----------------------------------------------------------------------------
# Tile-size helpers
# ----------------------------------------------------------------------------
def _pick_row_tile(H, W, cin, cout, esz, budget=_CONV_VMEM_BUDGET, max_rows=64):
    """Row-tile height TH derived from a VMEM budget (slab dominates)."""
    wq = W + 2
    per_row = (2 * 9 * cin * wq * esz      # im2col slab + roll temporaries
               + 2 * cin * wq * esz        # double-buffered input tile
               + cout * wq * (4 + 2 * 4))  # f32 acc + double-buffered output
    th_max = max(1, min(max_rows, H, budget // max(per_row, 1)))
    # Prefer a divisor of H (no wasted padded rows) when one is close to the cap.
    for th in range(th_max, 0, -1):
        if H % th == 0:
            if 2 * th >= th_max:
                return th
            break
    return th_max                          # awkward H -> pad rows, crop after


def _pick_wpad(W, TH):
    """Smallest right-pad >= 2 making Mo = TH*(W+pad) a multiple of 128."""
    limit = max(32, W // 4)
    for pad in range(2, limit + 1):
        if (TH * (W + pad)) % 128 == 0:
            return pad
    return 2                               # fall back to masked stores


# ----------------------------------------------------------------------------
# Pallas kernel 1: 3x3 conv + bias + PReLU, channel-major, single fat MXU dot
# ----------------------------------------------------------------------------
def _conv_cm_kernel(x_ref, w_ref, b_ref, a_ref, o_ref, *, offs, mo, lin):
    # x_ref: (1, 1, Cin, Lin)  haloed, flattened, channel-major row tile
    # w_ref: (Cout, 9*Cin)     per-tap weights, tap-major / channel-minor
    # b_ref / a_ref: (Cout, 1) bias / PReLU alpha (broadcast over lanes)
    # o_ref: (1, 1, Cout, Mo)  lane-dense flattened output tile (Mo % 128 == 0)
    x = x_ref[0, 0]                                        # (Cin, Lin)

    # Build the (9*Cin, Mo) im2col slab in VMEM.  The 8 shifted tap views come
    # from XLU lane rotations (pltpu.roll), not ld/st + VALU copies; the extra
    # tail of the 128-aligned tile guarantees the rolled wrap-around never
    # lands inside the first Mo lanes.
    parts = [x[:, :mo]]
    for off in offs[1:]:
        parts.append(pltpu.roll(x, shift=lin - off, axis=1)[:, :mo])
    slab = jnp.concatenate(parts, axis=0)                  # (9*Cin, Mo)

    # One fat MXU matmul (K = 9*Cin) replaces nine K<=24 dots + 8 VALU adds
    # (also makes the v7x MRB-accumulation question moot).
    acc = jnp.dot(w_ref[...], slab, preferred_element_type=jnp.float32)
    acc = acc + b_ref[...]                                 # (Cout, 1) broadcast
    out = jnp.where(acc >= 0.0, acc, a_ref[...] * acc)     # PReLU, f32 epilogue
    o_ref[0, 0] = out.astype(o_ref.dtype)


def conv3x3_prelu_cm(x, w, b, alpha):
    """3x3 / stride-1 / pad-1 conv + bias + per-channel PReLU.

    x: (N, Cin, H, W) NCHW, w: (3, 3, Cin, Cout) HWIO, b / alpha: (Cout,)
    returns (N, Cout, H, W).
    """
    N, Cin, H, W = x.shape
    Cout = w.shape[-1]
    esz = jnp.dtype(MXU_DTYPE).itemsize

    TH = _pick_row_tile(H, W, Cin, Cout, esz)
    T = -(-H // TH)                       # ceil-div; awkward H -> pad + crop
    pad_w = _pick_wpad(W, TH)
    Wq = W + pad_w
    Mo = TH * Wq                          # flat outputs per tile (lane axis)
    Lin = _round_up((TH + 3) * Wq, 128)   # flat inputs per tile, 128-aligned

    # Zero pad: 1 left col, pad_w-1 right cols, 1 top row, enough bottom rows
    # so every tile sees a full (TH+3)-row haloed window.
    xp = jnp.pad(x, ((0, 0), (0, 0), (1, T * TH - H + 2), (1, pad_w - 1)))
    flat = xp.reshape(N, Cin, (T * TH + 3) * Wq)
    flat = jnp.pad(flat, ((0, 0), (0, 0), (0, Lin - (TH + 3) * Wq)))
    if T == 1:
        tiles = flat.reshape(N, 1, Cin, Lin)       # no duplication, free reshape
    else:
        # TODO(synk): for T > 1 this still materializes the overlapped row
        # windows in HBM; switch to memory_space=pl.ANY + in-kernel
        # make_async_copy(pl.ds(t*TH*Wq, Lin)) to save one HBM pass per layer.
        tiles = jnp.stack(
            [flat[:, :, t * TH * Wq: t * TH * Wq + Lin] for t in range(T)],
            axis=1)

    # Tap order (ky major, kx minor) matches the flat offsets below.
    offs = tuple(ky * Wq + kx for ky in range(3) for kx in range(3))
    w_flat = jnp.transpose(w, (3, 0, 1, 2)).reshape(Cout, 9 * Cin)

    kernel = functools.partial(_conv_cm_kernel, offs=offs, mo=Mo, lin=Lin)
    out = pl.pallas_call(
        kernel,
        out_shape=jax.ShapeDtypeStruct((N, T, Cout, Mo), x.dtype),
        grid=(N, T),
        in_specs=[
            # NOTE(v5e): add pipeline_mode=pl.Buffered(3) here if the halo-row
            # DMA is exposed (plenty of VMEM headroom on v5e/v6e).
            pl.BlockSpec((1, 1, Cin, Lin), lambda n, t: (n, t, 0, 0)),
            pl.BlockSpec((Cout, 9 * Cin), lambda n, t: (0, 0)),
            pl.BlockSpec((Cout, 1), lambda n, t: (0, 0)),
            pl.BlockSpec((Cout, 1), lambda n, t: (0, 0)),
        ],
        out_specs=pl.BlockSpec((1, 1, Cout, Mo), lambda n, t: (n, t, 0, 0)),
        compiler_params=pltpu.CompilerParams(
            dimension_semantics=("parallel", "parallel"),
            vmem_limit_bytes=_VMEM_LIMIT),
    )(tiles.astype(MXU_DTYPE), w_flat.astype(MXU_DTYPE),
      b.reshape(Cout, 1).astype(jnp.float32),
      alpha.reshape(Cout, 1).astype(jnp.float32))

    out = out.reshape(N, T, Cout, TH, Wq)[..., :W]            # drop pad columns
    out = jnp.transpose(out, (0, 2, 1, 3, 4)).reshape(N, Cout, T * TH, W)
    return out[:, :, :H, :]                                    # drop pad rows


# ----------------------------------------------------------------------------
# Pallas kernel 2: fused sigmoid(mask) + merge (+ clamp for the final stage)
# Channel-major flattened blocks: lane axis = H*W, zero wrapper transposes.
# ----------------------------------------------------------------------------
def _merge_math(w0, w1, m):
    s = 0.5 * (jnp.tanh(0.5 * m) + 1.0)        # sigmoid via EUP tanh
    return s, w0 * s + w1 * (1.0 - s)


def _merge_kernel(w0_ref, w1_ref, m_ref, msig_ref, merged_ref):
    s, mg = _merge_math(w0_ref[0], w1_ref[0], m_ref[0])
    msig_ref[0] = s.astype(msig_ref.dtype)
    merged_ref[0] = mg.astype(merged_ref.dtype)


def _merge_pred_kernel(w0_ref, w1_ref, m_ref, msig_ref, merged_ref, pred_ref):
    s, mg = _merge_math(w0_ref[0], w1_ref[0], m_ref[0])
    msig_ref[0] = s.astype(msig_ref.dtype)
    merged_ref[0] = mg.astype(merged_ref.dtype)
    pred_ref[0] = jnp.clip(mg, 0.0, 1.0).astype(pred_ref.dtype)


def fused_merge(w0, w1, mask, with_pred):
    """All NCHW: w0/w1 (N,3,H,W), mask (N,1,H,W). pred only when with_pred."""
    N, C, H, W = w0.shape
    M = H * W
    TM = min(8192, _round_up(M, 128))     # bounded lane tile (>=85% of roofline)
    Mp = _round_up(M, TM)                 # pad the tail tile instead of TM = M
    T = Mp // TM

    def flat(a):
        a = a.reshape(N, a.shape[1], M)
        return jnp.pad(a, ((0, 0), (0, 0), (0, Mp - M))) if Mp != M else a

    w0f, w1f, mf = flat(w0), flat(w1), flat(mask)

    out_shape = [jax.ShapeDtypeStruct((N, 1, Mp), w0.dtype),
                 jax.ShapeDtypeStruct((N, C, Mp), w0.dtype)]
    out_specs = [pl.BlockSpec((1, 1, TM), lambda n, t: (n, 0, t)),
                 pl.BlockSpec((1, C, TM), lambda n, t: (n, 0, t))]
    kern = _merge_kernel
    if with_pred:
        out_shape.append(jax.ShapeDtypeStruct((N, C, Mp), w0.dtype))
        out_specs.append(pl.BlockSpec((1, C, TM), lambda n, t: (n, 0, t)))
        kern = _merge_pred_kernel

    outs = pl.pallas_call(
        kern,
        out_shape=tuple(out_shape),
        grid=(N, T),
        in_specs=[pl.BlockSpec((1, C, TM), lambda n, t: (n, 0, t)),
                  pl.BlockSpec((1, C, TM), lambda n, t: (n, 0, t)),
                  pl.BlockSpec((1, 1, TM), lambda n, t: (n, 0, t))],
        out_specs=tuple(out_specs),
        compiler_params=pltpu.CompilerParams(
            dimension_semantics=("parallel", "parallel"),
            vmem_limit_bytes=_VMEM_LIMIT),
    )(w0f, w1f, mf)

    def unflat(a, c):
        return a[:, :, :M].reshape(N, c, H, W)

    msig = unflat(outs[0], 1)
    merged = unflat(outs[1], C)
    pred = unflat(outs[2], C) if with_pred else None
    return msig, merged, pred


# ----------------------------------------------------------------------------
# JAX glue (all NCHW): pixel shuffle, bilinear resize, backward warp
# ----------------------------------------------------------------------------
def pixel_shuffle_nchw(x, r=2):
    N, C, H, W = x.shape
    Co = C // (r * r)
    x = x.reshape(N, Co, r, r, H, W)
    x = jnp.transpose(x, (0, 1, 4, 2, 5, 3))
    return x.reshape(N, Co, H * r, W * r)


def _resize_coords(out_size, in_size):
    scale = in_size / out_size
    src = (jnp.arange(out_size, dtype=jnp.float32) + 0.5) * scale - 0.5
    src = jnp.maximum(src, 0.0)
    i0f = jnp.floor(src)
    frac = src - i0f
    i0 = jnp.minimum(i0f.astype(jnp.int32), in_size - 1)
    i1 = jnp.minimum(i0 + 1, in_size - 1)
    return i0, i1, frac


def bilinear_resize(x, scale_factor):
    """PyTorch F.interpolate(..., mode='bilinear', align_corners=False), NCHW."""
    N, C, H, W = x.shape
    OH = int(math.floor(H * scale_factor + 1e-9))
    OW = int(math.floor(W * scale_factor + 1e-9))
    if OH == H and OW == W:
        return x
    y0, y1, fy = _resize_coords(OH, H)
    x0, x1, fx = _resize_coords(OW, W)
    r0 = jnp.take(x, y0, axis=2)
    r1 = jnp.take(x, y1, axis=2)

    def hblend(r):
        c0 = jnp.take(r, x0, axis=3)
        c1 = jnp.take(r, x1, axis=3)
        return c0 * (1.0 - fx)[None, None, None, :] + c1 * fx[None, None, None, :]

    top, bot = hblend(r0), hblend(r1)
    fy = fy[None, None, :, None]
    return top * (1.0 - fy) + bot * fy


def backward_warp(img, flow):
    """Bilinear backward warp with border clamping (NCHW).
    flow[:, 0] = dx, flow[:, 1] = dy."""
    # TODO(synk): data-dependent bilinear gather kept in JAX (no rectangular BlockSpec).
    N, C, H, W = img.shape
    gx = jnp.arange(W, dtype=img.dtype)[None, None, :] + flow[:, 0]
    gy = jnp.arange(H, dtype=img.dtype)[None, :, None] + flow[:, 1]
    gx = jnp.clip(gx, 0.0, W - 1.0)
    gy = jnp.clip(gy, 0.0, H - 1.0)
    x0f, y0f = jnp.floor(gx), jnp.floor(gy)
    fx, fy = gx - x0f, gy - y0f
    x0 = x0f.astype(jnp.int32)
    y0 = y0f.astype(jnp.int32)
    x1 = jnp.clip(x0 + 1, 0, W - 1)
    y1 = jnp.clip(y0 + 1, 0, H - 1)
    img_f = img.reshape(N, C, H * W)

    def gather(yi, xi):
        idx = (yi * W + xi).reshape(N, 1, H * W)
        return jnp.take_along_axis(img_f, idx, axis=2).reshape(N, C, H, W)

    v00, v01 = gather(y0, x0), gather(y0, x1)
    v10, v11 = gather(y1, x0), gather(y1, x1)
    w00 = ((1 - fy) * (1 - fx))[:, None]
    w01 = ((1 - fy) * fx)[:, None]
    w10 = (fy * (1 - fx))[:, None]
    w11 = (fy * fx)[:, None]
    return v00 * w00 + v01 * w01 + v10 * w10 + v11 * w11


# ----------------------------------------------------------------------------
# Head + Motion_estimator forward (mirrors the PyTorch module, NCHW)
# ----------------------------------------------------------------------------
def head_forward(layers, motion_feature, x, flow, scale):
    mf = pixel_shuffle_nchw(pixel_shuffle_nchw(motion_feature, 2), 2)
    if scale != 4:
        x = bilinear_resize(x, 4.0 / scale)
    if flow is not None:
        if scale != 4:
            flow = bilinear_resize(flow, 4.0 / scale) * (4.0 / scale)
        x = jnp.concatenate([x, flow], axis=1)
    h = jnp.concatenate([mf, x], axis=1)
    # TODO(synk): fuse the 3 conv layers into one pallas_call with the (c, tile)
    # intermediates in VMEM scratch (saves 2 HBM round-trips per head).
    for (w, b, a) in layers:
        h = conv3x3_prelu_cm(h, w, b, a)
    if scale != 4:
        # integer-division factor is fine for SCALES=(4, 8) (matches reference).
        h = bilinear_resize(h, scale // 4)
        flow_out = h[:, :4] * float(scale // 4)
    else:
        flow_out = h[:, :4]
    mask = h[:, 4:5]
    return flow_out, mask


def avg_pool_nchw(x, k):
    N, C, H, W = x.shape
    return x.reshape(N, C, H // k, k, W // k, k).mean(axis=(3, 5))


def feature_bone(params, img0, img1):
    # Synthetic stand-in for the injected backbone: two conv+PReLU pyramid levels.
    x = jnp.concatenate([img0, img1], axis=0)                 # (2B, 3, H, W)
    f1 = conv3x3_prelu_cm(avg_pool_nchw(x, 4), *params["b1"])   # (2B, E0, H/4, W/4)
    f2 = conv3x3_prelu_cm(avg_pool_nchw(f1, 2), *params["b2"])  # (2B, E1, H/8, W/8)
    return [f1, f2]


SCALES = (4, 8)          # per-stage scales (Head i uses scales[-1-i])
EMBED_DIMS = (16, 24)    # backbone channel dims
HIDDEN_DIMS = (16, 16)   # Head hidden widths
NUM_STAGES = len(HIDDEN_DIMS)


def motion_estimator_forward(params, imgs, timestep=0.5):
    img0, img1 = imgs[:, :3], imgs[:, 3:6]
    B = imgs.shape[0]
    af = feature_bone(params, img0, img1)

    flow, mask = None, None
    flow_list, mask_list, merged = [], [], []
    warped_img0, warped_img1 = img0, img1
    pred = None

    for i in range(NUM_STAGES):
        feat = af[-1 - i]
        mf = jnp.concatenate([feat[:B], feat[B:]], axis=1)
        t = jnp.full_like(img0[:, :1], timestep)
        if flow is None:
            x = jnp.concatenate([img0, img1, t], axis=1)
            flow, mask = head_forward(params["heads"][i], mf, x, None, SCALES[-1 - i])
        else:
            x = jnp.concatenate(
                [img0, img1, warped_img0, warped_img1, mask, t], axis=1)
            fd, md = head_forward(params["heads"][i], mf, x, flow, SCALES[-1 - i])
            flow = flow + fd
            mask = mask + md
        warped_img0 = backward_warp(img0, flow[:, :2])
        warped_img1 = backward_warp(img1, flow[:, 2:4])
        is_last = (i == NUM_STAGES - 1)
        # clamped `pred` only materialized on the final stage (refine=None).
        msig, mg, p = fused_merge(warped_img0, warped_img1, mask, with_pred=is_last)
        if is_last:
            pred = p
        mask_list.append(msig)
        flow_list.append(flow)
        merged.append(mg)

    return flow_list, mask_list, merged, pred


# ----------------------------------------------------------------------------
# Deterministic parameter init + pure-JAX conv reference (for self-check)
# ----------------------------------------------------------------------------
def init_conv(key, cin, cout):
    kw, kb = jax.random.split(key)
    w = jax.random.normal(kw, (3, 3, cin, cout), jnp.float32) / math.sqrt(9.0 * cin)
    b = jax.random.normal(kb, (cout,), jnp.float32) * 0.01
    a = jnp.full((cout,), 0.25, jnp.float32)                     # PReLU default
    return (w, b, a)


def init_params(key):
    keys = jax.random.split(key, 16)
    params = {
        "b1": init_conv(keys[0], 3, EMBED_DIMS[0]),
        "b2": init_conv(keys[1], EMBED_DIMS[0], EMBED_DIMS[1]),
        "heads": [],
    }
    kidx = 2
    for i in range(NUM_STAGES):
        in_planes = EMBED_DIMS[-1 - i]
        c = HIDDEN_DIMS[-1 - i]
        in_else = 7 if i == 0 else 18
        cin0 = in_planes * 2 // 16 + in_else
        layers = [
            init_conv(keys[kidx + 0], cin0, c),
            init_conv(keys[kidx + 1], c, c),
            init_conv(keys[kidx + 2], c, 5),
        ]
        kidx += 3
        params["heads"].append(layers)
    return params


def conv3x3_prelu_reference(x, w, b, alpha):
    y = jax.lax.conv_general_dilated(
        x, w, window_strides=(1, 1), padding="SAME",
        dimension_numbers=("NCHW", "HWIO", "NCHW"))
    y = y + b[None, :, None, None]
    return jnp.where(y >= 0.0, y, alpha[None, :, None, None] * y)


if __name__ == "__main__":
    key = jax.random.PRNGKey(0)
    kp, ki, kc1, kc2, kw1, kw2 = jax.random.split(key, 6)

    # --- self-check: Pallas conv vs. XLA conv reference (T==1 and T>1 paths)
    for (shape, cin, cout, kk, kx) in [((2, 10, 16, 16), 10, 16, kw1, kc1),
                                       ((1, 6, 67, 20), 6, 8, kw2, kc2)]:
        xc = jax.random.normal(kx, shape, jnp.float32)
        wc, bc, ac = init_conv(kk, cin, cout)
        got = jax.jit(conv3x3_prelu_cm)(xc, wc, bc, ac)
        want = conv3x3_prelu_reference(xc, wc, bc, ac)
        err = float(jnp.max(jnp.abs(got - want)))
        assert err < 5e-2, f"conv kernel mismatch (shape={shape}): err={err}"

    # --- full forward at a small NCHW shape (two RGB frames stacked on C)
    params = init_params(kp)
    B, H, W = 2, 32, 32
    imgs = jax.random.uniform(ki, (B, 6, H, W), dtype=jnp.float32)

    fwd = jax.jit(functools.partial(motion_estimator_forward, timestep=0.5))
    flow_list, mask_list, merged, pred = fwd(params, imgs)
    jax.block_until_ready(pred)
    jax.block_until_ready(flow_list[-1])
    jax.block_until_ready(mask_list[-1])
    jax.block_until_ready(merged[-1])

    assert pred.shape == (B, 3, H, W)
    assert flow_list[-1].shape == (B, 4, H, W)
    assert mask_list[-1].shape == (B, 1, H, W)
    assert merged[-1].shape == (B, 3, H, W)
    print("KERNEL_OK")
</pallas_src>

<mosaic_0001>
module attributes {stable_mosaic.version = 11 : i64} {
  func.func @_conv_cm_kernel(%arg0: i32, %arg1: i32, %arg2: memref<1x1x10x512xf32, #tpu.memory_space<vmem>>, %arg3: memref<16x90xf32, #tpu.memory_space<vmem>>, %arg4: memref<16x1xf32, #tpu.memory_space<vmem>>, %arg5: memref<16x1xf32, #tpu.memory_space<vmem>>, %arg6: memref<1x1x16x384xf32, #tpu.memory_space<vmem>>) attributes {dimension_semantics = [#tpu.dimension_semantics<parallel>, #tpu.dimension_semantics<parallel>], iteration_bounds = array<i64: 2, 1>, scalar_prefetch = 0 : i64, scratch_operands = 0 : i64, tpu.core_type = #tpu.core_type<tc>, window_params = [{transform_indices = @transform_0, window_bounds = array<i64: 1, 1, 10, 512>}, {pipeline_mode = #tpu.pipeline_mode<synchronous>, transform_indices = @transform_1, window_bounds = array<i64: 16, 90>}, {pipeline_mode = #tpu.pipeline_mode<synchronous>, transform_indices = @transform_2, window_bounds = array<i64: 16, 1>}, {pipeline_mode = #tpu.pipeline_mode<synchronous>, transform_indices = @transform_3, window_bounds = array<i64: 16, 1>}, {transform_indices = @transform_4, window_bounds = array<i64: 1, 1, 16, 384>}]} {
    %c0 = arith.constant 0 : index
    %c0_0 = arith.constant 0 : index
    %c0_1 = arith.constant 0 : index
    %c0_2 = arith.constant 0 : index
    %0 = vector.load %arg2[%c0, %c0_0, %c0_1, %c0_2] : memref<1x1x10x512xf32, #tpu.memory_space<vmem>>, vector<1x1x10x512xf32>
    %1 = vector.shape_cast %0 : vector<1x1x10x512xf32> to vector<10x512xf32>
    %2 = vector.extract_strided_slice %1 {offsets = [0, 0], sizes = [10, 384], strides = [1, 1]} : vector<10x512xf32> to vector<10x384xf32>
    %c511_i32 = arith.constant 511 : i32
    %3 = tpu.dynamic_rotate %1 by %c511_i32 dim 1 : vector<10x512xf32>, i32 -> vector<10x512xf32>
    %4 = vector.extract_strided_slice %3 {offsets = [0, 0], sizes = [10, 384], strides = [1, 1]} : vector<10x512xf32> to vector<10x384xf32>
    %c510_i32 = arith.constant 510 : i32
    %5 = tpu.dynamic_rotate %1 by %c510_i32 dim 1 : vector<10x512xf32>, i32 -> vector<10x512xf32>
    %6 = vector.extract_strided_slice %5 {offsets = [0, 0], sizes = [10, 384], strides = [1, 1]} : vector<10x512xf32> to vector<10x384xf32>
    %c488_i32 = arith.constant 488 : i32
    %7 = tpu.dynamic_rotate %1 by %c488_i32 dim 1 : vector<10x512xf32>, i32 -> vector<10x512xf32>
    %8 = vector.extract_strided_slice %7 {offsets = [0, 0], sizes = [10, 384], strides = [1, 1]} : vector<10x512xf32> to vector<10x384xf32>
    %c487_i32 = arith.constant 487 : i32
    %9 = tpu.dynamic_rotate %1 by %c487_i32 dim 1 : vector<10x512xf32>, i32 -> vector<10x512xf32>
    %10 = vector.extract_strided_slice %9 {offsets = [0, 0], sizes = [10, 384], strides = [1, 1]} : vector<10x512xf32> to vector<10x384xf32>
    %c486_i32 = arith.constant 486 : i32
    %11 = tpu.dynamic_rotate %1 by %c486_i32 dim 1 : vector<10x512xf32>, i32 -> vector<10x512xf32>
    %12 = vector.extract_strided_slice %11 {offsets = [0, 0], sizes = [10, 384], strides = [1, 1]} : vector<10x512xf32> to vector<10x384xf32>
    %c464_i32 = arith.constant 464 : i32
    %13 = tpu.dynamic_rotate %1 by %c464_i32 dim 1 : vector<10x512xf32>, i32 -> vector<10x512xf32>
    %14 = vector.extract_strided_slice %13 {offsets = [0, 0], sizes = [10, 384], strides = [1, 1]} : vector<10x512xf32> to vector<10x384xf32>
    %c463_i32 = arith.constant 463 : i32
    %15 = tpu.dynamic_rotate %1 by %c463_i32 dim 1 : vector<10x512xf32>, i32 -> vector<10x512xf32>
    %16 = vector.extract_strided_slice %15 {offsets = [0, 0], sizes = [10, 384], strides = [1, 1]} : vector<10x512xf32> to vector<10x384xf32>
    %c462_i32 = arith.constant 462 : i32
    %17 = tpu.dynamic_rotate %1 by %c462_i32 dim 1 : vector<10x512xf32>, i32 -> vector<10x512xf32>
    %18 = vector.extract_strided_slice %17 {offsets = [0, 0], sizes = [10, 384], strides = [1, 1]} : vector<10x512xf32> to vector<10x384xf32>
    %19 = tpu.concatenate %2, %4, %6, %8, %10, %12, %14, %16, %18 in 0 : vector<10x384xf32>, vector<10x384xf32>, vector<10x384xf32>, vector<10x384xf32>, vector<10x384xf32>, vector<10x384xf32>, vector<10x384xf32>, vector<10x384xf32>, vector<10x384xf32> -> vector<90x384xf32>
    %c0_3 = arith.constant 0 : index
    %c0_4 = arith.constant 0 : index
    %20 = vector.load %arg3[%c0_3, %c0_4] : memref<16x90xf32, #tpu.memory_space<vmem>>, vector<16x90xf32>
    %cst = arith.constant dense<0.000000e+00> : vector<16x384xf32>
    %21 = tpu.matmul %20, %19, %cst {dimension_numbers = #tpu.dot_dimension_numbers<[1], [0], [0], [1], [0, 0, 1, 1], [], []>} : vector<16x90xf32>, vector<90x384xf32>, vector<16x384xf32> -> vector<16x384xf32>
    %c0_5 = arith.constant 0 : index
    %c0_6 = arith.constant 0 : index
    %22 = vector.load %arg4[%c0_5, %c0_6] : memref<16x1xf32, #tpu.memory_space<vmem>>, vector<16x1xf32>
    %23 = vector.broadcast %22 : vector<16x1xf32> to vector<16x384xf32>
    %24 = arith.addf %21, %23 : vector<16x384xf32>
    %cst_7 = arith.constant 0.000000e+00 : f32
    %25 = vector.broadcast %cst_7 : f32 to vector<16x384xf32>
    %26 = arith.cmpf oge, %24, %25 : vector<16x384xf32>
    %c0_8 = arith.constant 0 : index
    %c0_9 = arith.constant 0 : index
    %27 = vector.load %arg5[%c0_8, %c0_9] : memref<16x1xf32, #tpu.memory_space<vmem>>, vector<16x1xf32>
    %28 = vector.broadcast %27 : vector<16x1xf32> to vector<16x384xf32>
    %29 = arith.mulf %28, %24 : vector<16x384xf32>
    %30 = arith.select %26, %24, %29 : vector<16x384xi1>, vector<16x384xf32>
    %c0_10 = arith.constant 0 : index
    %c0_11 = arith.constant 0 : index
    %c0_12 = arith.constant 0 : index
    %c0_13 = arith.constant 0 : index
    %31 = vector.load %arg6[%c0_10, %c0_11, %c0_12, %c0_13] : memref<1x1x16x384xf32, #tpu.memory_space<vmem>>, vector<1x1x16x384xf32>
    %32 = vector.shape_cast %31 : vector<1x1x16x384xf32> to vector<16x384xf32>
    %33 = vector.shape_cast %30 : vector<16x384xf32> to vector<1x1x16x384xf32>
    tpu.vector_store %arg6[%c0_10, %c0_11, %c0_12, %c0_13], %33 {strides = array<i32>} : memref<1x1x16x384xf32, #tpu.memory_space<vmem>>, vector<1x1x16x384xf32>,
    return
  }
  func.func @transform_0(%arg0: i32, %arg1: i32) -> (i32, i32, i32, i32) {
    %c0_i32 = arith.constant 0 : i32
    %c0_i32_0 = arith.constant 0 : i32
    %c0_i32_1 = arith.constant 0 : i32
    return %arg0, %arg1, %c0_i32, %c0_i32_0 : i32, i32, i32, i32
  }
  func.func @transform_1(%arg0: i32, %arg1: i32) -> (i32, i32) {
    %c0_i32 = arith.constant 0 : i32
    %c0_i32_0 = arith.constant 0 : i32
    %c0_i32_1 = arith.constant 0 : i32
    return %c0_i32, %c0_i32_0 : i32, i32
  }
  func.func @transform_2(%arg0: i32, %arg1: i32) -> (i32, i32) {
    %c0_i32 = arith.constant 0 : i32
    %c0_i32_0 = arith.constant 0 : i32
    %c0_i32_1 = arith.constant 0 : i32
    return %c0_i32, %c0_i32_0 : i32, i32
  }
  func.func @transform_3(%arg0: i32, %arg1: i32) -> (i32, i32) {
    %c0_i32 = arith.constant 0 : i32
    %c0_i32_0 = arith.constant 0 : i32
    %c0_i32_1 = arith.constant 0 : i32
    return %c0_i32, %c0_i32_0 : i32, i32
  }
  func.func @transform_4(%arg0: i32, %arg1: i32) -> (i32, i32, i32, i32) {
    %c0_i32 = arith.constant 0 : i32
    %c0_i32_0 = arith.constant 0 : i32
    %c0_i32_1 = arith.constant 0 : i32
    return %arg0, %arg1, %c0_i32, %c0_i32_0 : i32, i32, i32, i32
  }
}

</mosaic_0001>

<llo_original>
// kernel: conv3x3_prelu_cm.1
$region0: #{conv3x3_prelu_cm.1}
  #allocation0 [shape = 'u32[]', space=smem, size = 0x4, offset = 0x4, fixed_abs, tag = 'smem constant byte address 0x4 - core index']
  #allocation1 [shape = 'u32[144,128]{1,0:T(1,128)}', space=vmem, size = 0x12000, scoped, tag = 'internal scratch']
  %s0 = inlined_call_operand.vmem [shape: f32[2,1,10,512], index: 0, kind: input, shape index: {}]
  %s1 = inlined_call_operand.vmem [shape: f32[16,90], index: 1, kind: input, shape index: {}]
  %s2 = inlined_call_operand.vmem [shape: f32[16,1], index: 2, kind: input, shape index: {}]
  %s3 = inlined_call_operand.vmem [shape: f32[16,1], index: 3, kind: input, shape index: {}]
  %s4 = inlined_call_operand.vmem [shape: f32[2,1,16,384], index: 4, kind: output, shape index: {}]
  %s5 = sld [smem:[#allocation0]]
  $region49: #{conv3x3_prelu_cm.1} parent=0
    _
  %s7 = ssub.s32 1, %s5
  %s8 = scalar_select 0, %s7, %s5
  loop: start=0, step=1, limit=4
  $region2: #{conv3x3_prelu_cm.1} parent=0 // loop_pre_header
    _
  $region3: #{conv3x3_prelu_cm.1} parent=0 // loop_header
    %s10 = sphi 0, %s14
    %p11 = scmp.ge.s32.totalorder %s10, 4
    %s17 = sphi 0, %s29
    %s18 = sphi 0, %s25
    %s19 = sphi 0, %s17
    %s20 = sphi 0, %s18
    %s21 = sphi 0, %s19
    %s22 = sphi 0, %s20
    %s34 = sphi 0, %s36
    %s37 = sphi 0, %s34
    %s38 = sphi 0, %s37
    %s54 = sphi 0, %s38
    %s58 = sphi 0, %s58
    %s60 = sphi 0, %s58
    %s61 = sphi 0, %s60
    %s75 = sphi 0, %s61
    %s79 = sphi 0, %s79
    %s81 = sphi 0, %s79
    %s82 = sphi 0, %s81
    %s96 = sphi 0, %s82
    %s100 = sphi 0, %s100
    %s102 = sphi 0, %s100
    %s103 = sphi 0, %s102
    %s117 = sphi 0, %s103
    %s125 = sphi 0, %s127
    %s128 = sphi 0, %s125
    %s129 = sphi 0, %s128
    %s145 = sphi 0, %s129
  $region4: #{conv3x3_prelu_cm.1} parent=0 // loop_header_branch
    %13 = sbr.rel (%p11) target = $region8
  $region5: #{conv3x3_prelu_cm.1} parent=0 // loop_body
    %s15 = ssub.s32 %s10, 1
    %s16 = ssub.s32 %s10, 2
    %s23 = sadd.s32 1, %s18
    %p24 = scmp.ge.s32.totalorder %s23, 1
    %s25 = scalar_select %p24, 0, %s23
    %s26 = sadd.s32 1, %s17
    %s27 = scalar_select %p24, %s26, %s17
    %p28 = scmp.ge.s32.totalorder %s27, 2
    %s29 = scalar_select %p28, 0, %s27
    %s30 = ssub.s32 %s17, %s29
    %s31 = ssub.s32 %s18, %s25
    %s32 = sor.u32 %s30, %s31
    %p33 = scmp.eq.s32.totalorder %s32, 0
    %s35 = sadd.s32 %s34, 1
    %s36 = scalar_select %p33, %s34, %s35
    %p39 = pneg %p33
    %p40 = scmp.eq.s32.totalorder %s10, 1
    %p41 = por %p39, %p40
    %p42 = scmp.ne.s32.totalorder %s34, %s37
    %p43 = scmp.eq.s32.totalorder %s10, 0
    %p44 = por %p42, %p43
    %p45 = scmp.ne.s32.totalorder %s34, %s37
    %p46 = scmp.eq.s32.totalorder %s15, 1
    %p47 = por %p45, %p46
    %p48 = scmp.ne.s32.totalorder %s37, %s38
    %p49 = scmp.eq.s32.totalorder %s15, 0
    %p50 = por %p48, %p49
    %p51 = scmp.ne.s32.totalorder %s37, %s38
    %p52 = scmp.eq.s32.totalorder %s16, 1
    %p53 = por %p51, %p52
    %p55 = scmp.ne.s32.totalorder %s38, %s54
    %p56 = scmp.eq.s32.totalorder %s16, 0
    %p57 = por %p55, %p56
    %s59 = sadd.s32 %s58, 1
    %p62 = scmp.eq.s32.totalorder %s10, 1
    %p63 = scmp.ne.s32.totalorder %s58, %s60
    %p64 = scmp.eq.s32.totalorder %s10, 0
    %p65 = por %p63, %p64
    %p66 = scmp.ne.s32.totalorder %s58, %s60
    %p67 = scmp.eq.s32.totalorder %s15, 1
    %p68 = por %p66, %p67
    %p69 = scmp.ne.s32.totalorder %s60, %s61
    %p70 = scmp.eq.s32.totalorder %s15, 0
    %p71 = por %p69, %p70
    %p72 = scmp.ne.s32.totalorder %s60, %s61
    %p73 = scmp.eq.s32.totalorder %s16, 1
    %p74 = por %p72, %p73
    %p76 = scmp.ne.s32.totalorder %s61, %s75
    %p77 = scmp.eq.s32.totalorder %s16, 0
    %p78 = por %p76, %p77
    %s80 = sadd.s32 %s79, 1
    %p83 = scmp.eq.s32.totalorder %s10, 1
    %p84 = scmp.ne.s32.totalorder %s79, %s81
    %p85 = scmp.eq.s32.totalorder %s10, 0
    %p86 = por %p84, %p85
    %p87 = scmp.ne.s32.totalorder %s79, %s81
    %p88 = scmp.eq.s32.totalorder %s15, 1
    %p89 = por %p87, %p88
    %p90 = scmp.ne.s32.totalorder %s81, %s82
    %p91 = scmp.eq.s32.totalorder %s15, 0
    %p92 = por %p90, %p91
    %p93 = scmp.ne.s32.totalorder %s81, %s82
    %p94 = scmp.eq.s32.totalorder %s16, 1
    %p95 = por %p93, %p94
    %p97 = scmp.ne.s32.totalorder %s82, %s96
    %p98 = scmp.eq.s32.totalorder %s16, 0
    %p99 = por %p97, %p98
    %s101 = sadd.s32 %s100, 1
    %p104 = scmp.eq.s32.totalorder %s10, 1
    %p105 = scmp.ne.s32.totalorder %s100, %s102
    %p106 = scmp.eq.s32.totalorder %s10, 0
    %p107 = por %p105, %p106
    %p108 = scmp.ne.s32.totalorder %s100, %s102
    %p109 = scmp.eq.s32.totalorder %s15, 1
    %p110 = por %p108, %p109
    %p111 = scmp.ne.s32.totalorder %s102, %s103
    %p112 = scmp.eq.s32.totalorder %s15, 0
    %p113 = por %p111, %p112
    %p114 = scmp.ne.s32.totalorder %s102, %s103
    %p115 = scmp.eq.s32.totalorder %s16, 1
    %p116 = por %p114, %p115
    %p118 = scmp.ne.s32.totalorder %s103, %s117
    %p119 = scmp.eq.s32.totalorder %s16, 0
    %p120 = por %p118, %p119
    %s121 = ssub.s32 %s17, %s29
    %s122 = ssub.s32 %s18, %s25
    %s123 = sor.u32 %s121, %s122
    %p124 = scmp.eq.s32.totalorder %s123, 0
    %s126 = sadd.s32 %s125, 1
    %s127 = scalar_select %p124, %s125, %s126
    %p130 = pneg %p124
    %p131 = scmp.eq.s32.totalorder %s10, 1
    %p132 = por %p130, %p131
    %p133 = scmp.ne.s32.totalorder %s125, %s128
    %p134 = scmp.eq.s32.totalorder %s10, 0
    %p135 = por %p133, %p134
    %p136 = scmp.ne.s32.totalorder %s125, %s128
    %p137 = scmp.eq.s32.totalorder %s15, 1
    %p138 = por %p136, %p137
    %p139 = scmp.ne.s32.totalorder %s128, %s129
    %p140 = scmp.eq.s32.totalorder %s15, 0
    %p141 = por %p139, %p140
    %p142 = scmp.ne.s32.totalorder %s128, %s129
    %p143 = scmp.eq.s32.totalorder %s16, 1
    %p144 = por %p142, %p143
    %p146 = scmp.ne.s32.totalorder %s129, %s145
    %p147 = scmp.eq.s32.totalorder %s16, 0
    %p148 = por %p146, %p147
    %p149 = scmp.le.s32.totalorder 1, %s10
    %p150 = scmp.lt.s32.totalorder %s10, 3
    %p151 = pnand %p149, %p150
    %p152 = pneg %p151
    // Predicated region
    $region9: #{conv3x3_prelu_cm.1} parent=5 // pred_check
      _
    $region10: #{conv3x3_prelu_cm.1} parent=5 // pred_check_branch
      %154 = sbr.rel (%p151) target = $region12
    $region11: #{conv3x3_prelu_cm.1} parent=5 // pred_region
      %s155 = ssub.s32 %s10, 1
      // Predicated region
      $region13: #{conv3x3_prelu_cm.1} parent=11 // pred_check
        %p156 = pneg %p71
      $region14: #{conv3x3_prelu_cm.1} parent=11 // pred_check_branch
        %158 = sbr.rel (%p156) target = $region16
      $region15: #{conv3x3_prelu_cm.1} parent=11 // pred_region
        _
      $region16: #{conv3x3_prelu_cm.1} parent=11 // pred_fallthru
        _
      // Predicated region
      $region17: #{conv3x3_prelu_cm.1} parent=11 // pred_check
        %p159 = pneg %p92
      $region18: #{conv3x3_prelu_cm.1} parent=11 // pred_check_branch
        %161 = sbr.rel (%p159) target = $region20
      $region19: #{conv3x3_prelu_cm.1} parent=11 // pred_region
        _
      $region20: #{conv3x3_prelu_cm.1} parent=11 // pred_fallthru
        _
      // Predicated region
      $region21: #{conv3x3_prelu_cm.1} parent=11 // pred_check
        %p162 = pneg %p113
      $region22: #{conv3x3_prelu_cm.1} parent=11 // pred_check_branch
        %164 = sbr.rel (%p162) target = $region24
      $region23: #{conv3x3_prelu_cm.1} parent=11 // pred_region
        _
      $region24: #{conv3x3_prelu_cm.1} parent=11 // pred_fallthru
        _
    $region12: #{conv3x3_prelu_cm.1} parent=5 // pred_fallthru
      _
    %p165 = scmp.lt.s32.totalorder %s10, 2
    // Predicated region
    $region25: #{conv3x3_prelu_cm.1} parent=5 // pred_check
      %p166 = pneg %p165
    $region26: #{conv3x3_prelu_cm.1} parent=5 // pred_check_branch
      %168 = sbr.rel (%p166) target = $region28
    $region27: #{conv3x3_prelu_cm.1} parent=5 // pred_region
      // Predicated region
      $region29: #{conv3x3_prelu_cm.1} parent=27 // pred_check
        %p169 = pneg %p44
      $region30: #{conv3x3_prelu_cm.1} parent=27 // pred_check_branch
        %171 = sbr.rel (%p169) target = $region32
      $region31: #{conv3x3_prelu_cm.1} parent=27 // pred_region
        %p172 = scmp.lt.s32.totalorder %s17, 1
        %s173 = scalar_select %p172, %s17, 1
        %p174 = scmp.lt.s32.totalorder %s18, 0
        %s175 = scalar_select %p174, %s18, 0
        %s176 = smul.addr %s175, 8
        %s177 = smul.addr %s173, 8
        %s178 = sadd.s32 %s176, %s177
        %s179 = smul.addr %s178, 8
        %s180 = scalar_lea.vmem %s0, %s179
      $region32: #{conv3x3_prelu_cm.1} parent=27 // pred_fallthru
        _
    $region28: #{conv3x3_prelu_cm.1} parent=5 // pred_fallthru
      _
    %p181 = scmp.le.s32.totalorder 1, %s10
    %p182 = scmp.lt.s32.totalorder %s10, 3
    %p183 = pnand %p181, %p182
    %p184 = pneg %p183
    // Predicated region
    $region33: #{conv3x3_prelu_cm.1} parent=5 // pred_check
      _
    $region34: #{conv3x3_prelu_cm.1} parent=5 // pred_check_branch
      %186 = sbr.rel (%p183) target = $region36
    $region35: #{conv3x3_prelu_cm.1} parent=5 // pred_region
      %s187 = ssub.s32 %s10, 1
      %p188 = scmp.lt.s32.totalorder %s19, 1
      %s189 = scalar_select %p188, %s19, 1
      %p190 = scmp.lt.s32.totalorder %s20, 0
      %s191 = scalar_select %p190, %s20, 0
      %s192 = smul.addr %s191, 8
      %s193 = smul.addr %s189, 8
      %s194 = sadd.s32 %s192, %s193
      %s195 = smul.addr %s194, 8
      %s196 = scalar_lea.vmem %s0, %s195
      %p197 = pneg %p50
      %p198 = pneg %p47
      %p199 = pneg %p71
      %p200 = pneg %p68
      %p201 = pneg %p92
      %p202 = pneg %p89
      %p203 = pneg %p113
      %p204 = pneg %p110
      %p205 = pneg %p141
      %p206 = pneg %p138
      %p207 = scmp.lt.s32.totalorder %s19, 1
      %s208 = scalar_select %p207, %s19, 1
      %p209 = scmp.lt.s32.totalorder %s20, 0
      %s210 = scalar_select %p209, %s20, 0
      %s211 = smul.addr %s210, 6
      %s212 = smul.addr %s208, 6
      %s213 = sadd.s32 %s211, %s212
      %s214 = smul.addr %s213, 8
      %s215 = scalar_lea.vmem %s4, %s214
      %p216 = scmp.lt.s32.totalorder %s19, 1
      %s217 = scalar_select %p216, %s19, 1
      %p218 = scmp.lt.s32.totalorder %s20, 0
      %s219 = scalar_select %p218, %s20, 0
      %s220 = smul.addr %s219, 8
      %s221 = smul.addr %s217, 8
      %s222 = sadd.s32 %s220, %s221
      %s223 = smul.addr %s222, 8
      %s224 = scalar_lea.vmem %s0, %s223
      %p225 = scmp.lt.s32.totalorder %s19, 1
      %s226 = scalar_select %p225, %s19, 1
      %p227 = scmp.lt.s32.totalorder %s20, 0
      %s228 = scalar_select %p227, %s20, 0
      %s229 = smul.addr %s228, 6
      %s230 = smul.addr %s226, 6
      %s231 = sadd.s32 %s229, %s230
      %s232 = smul.addr %s231, 8
      %s233 = scalar_lea.vmem %s4, %s232
      %v234 = vld [vmem:[%s224] sm:$0xff]
      %v235 = vld [vmem:[%s224 + $0x8] sm:$0xff]
      %v236 = vld [vmem:[%s224 + $0x10] sm:$0xff]
      %v237 = vld [vmem:[%s224 + $0x18] sm:$0xff]
      %v238 = vld [vmem:[%s224 + $0x20] sm:$0x3]
      %v239 = vld [vmem:[%s224 + $0x28] sm:$0x3]
      %v240 = vld [vmem:[%s224 + $0x30] sm:$0x3]
      %v241 = vld [vmem:[%s224 + $0x38] sm:$0x3]
      %242 = vrot.lane.b32.xlu0 %v234, 127
      %v243 = vpop.permute.xlu0 %242
      %244 = vrot.lane.b32.xlu0 %v238, 127
      %v245 = vpop.permute.xlu0 %244
      %246 = vrot.lane.b32.xlu0 %v235, 127
      %v247 = vpop.permute.xlu0 %246
      %248 = vrot.lane.b32.xlu0 %v239, 127
      %v249 = vpop.permute.xlu0 %248
      %250 = vrot.lane.b32.xlu0 %v236, 127
      %v251 = vpop.permute.xlu0 %250
      %252 = vrot.lane.b32.xlu0 %v240, 127
      %v253 = vpop.permute.xlu0 %252
      %254 = vrot.lane.b32.xlu0 %v237, 127
      %v255 = vpop.permute.xlu0 %254
      %256 = vrot.lane.b32.xlu0 %v241, 127
      %v257 = vpop.permute.xlu0 %256
      %v258 = vlaneseq
      %v259 = vand.u32 %v258, 127
      %vm260 = vcmp.lt.s32.totalorder %v259, 127
      %v261 = vsel %vm260, %v251, %v255
      %v262 = vsel %vm260, %v253, %v257
      %v263 = vsel %vm260, %v247, %v251
      %v264 = vsel %vm260, %v249, %v253
      %v265 = vsel %vm260, %v243, %v247
      %v266 = vsel %vm260, %v245, %v249
      %267 = vrot.lane.b32.xlu0 %v234, 126
      %v268 = vpop.permute.xlu0 %267
      %269 = vrot.lane.b32.xlu0 %v238, 126
      %v270 = vpop.permute.xlu0 %269
      %271 = vrot.lane.b32.xlu0 %v235, 126
      %v272 = vpop.permute.xlu0 %271
      %273 = vrot.lane.b32.xlu0 %v239, 126
      %v274 = vpop.permute.xlu0 %273
      %275 = vrot.lane.b32.xlu0 %v236, 126
      %v276 = vpop.permute.xlu0 %275
      %277 = vrot.lane.b32.xlu0 %v240, 126
      %v278 = vpop.permute.xlu0 %277
      %279 = vrot.lane.b32.xlu0 %v237, 126
      %v280 = vpop.permute.xlu0 %279
      %281 = vrot.lane.b32.xlu0 %v241, 126
      %v282 = vpop.permute.xlu0 %281
      %vm283 = vcmp.lt.s32.totalorder %v259, 126
      %v284 = vsel %vm283, %v276, %v280
      %v285 = vsel %vm283, %v278, %v282
      %v286 = vsel %vm283, %v272, %v276
      %v287 = vsel %vm283, %v274, %v278
      %v288 = vsel %vm283, %v268, %v272
      %v289 = vsel %vm283, %v270, %v274
      %290 = vrot.lane.b32.xlu0 %v234, 104
      %v291 = vpop.permute.xlu0 %290
      %292 = vrot.lane.b32.xlu0 %v238, 104
      %v293 = vpop.permute.xlu0 %292
      %294 = vrot.lane.b32.xlu0 %v235, 104
      %v295 = vpop.permute.xlu0 %294
      %296 = vrot.lane.b32.xlu0 %v239, 104
      %v297 = vpop.permute.xlu0 %296
      %298 = vrot.lane.b32.xlu0 %v236, 104
      %v299 = vpop.permute.xlu0 %298
      %300 = vrot.lane.b32.xlu0 %v240, 104
      %v301 = vpop.permute.xlu0 %300
      %302 = vrot.lane.b32.xlu0 %v237, 104
      %v303 = vpop.permute.xlu0 %302
      %304 = vrot.lane.b32.xlu0 %v241, 104
      %v305 = vpop.permute.xlu0 %304
      %vm306 = vcmp.lt.s32.totalorder %v259, 104
      %v307 = vsel %vm306, %v299, %v303
      %v308 = vsel %vm306, %v301, %v305
      %v309 = vsel %vm306, %v295, %v299
      %v310 = vsel %vm306, %v297, %v301
      %v311 = vsel %vm306, %v291, %v295
      %v312 = vsel %vm306, %v293, %v297
      %313 = vrot.lane.b32.xlu0 %v234, 103
      %v314 = vpop.permute.xlu0 %313
      %315 = vrot.lane.b32.xlu0 %v238, 103
      %v316 = vpop.permute.xlu0 %315
      %317 = vrot.lane.b32.xlu0 %v235, 103
      %v318 = vpop.permute.xlu0 %317
      %319 = vrot.lane.b32.xlu0 %v239, 103
      %v320 = vpop.permute.xlu0 %319
      %321 = vrot.lane.b32.xlu0 %v236, 103
      %v322 = vpop.permute.xlu0 %321
      %323 = vrot.lane.b32.xlu0 %v240, 103
      %v324 = vpop.permute.xlu0 %323
      %325 = vrot.lane.b32.xlu0 %v237, 103
      %v326 = vpop.permute.xlu0 %325
      %327 = vrot.lane.b32.xlu0 %v241, 103
      %v328 = vpop.permute.xlu0 %327
      %vm329 = vcmp.lt.s32.totalorder %v259, 103
      %v330 = vsel %vm329, %v322, %v326
      %v331 = vsel %vm329, %v324, %v328
      %v332 = vsel %vm329, %v318, %v322
      %v333 = vsel %vm329, %v320, %v324
      %v334 = vsel %vm329, %v314, %v318
      %v335 = vsel %vm329, %v316, %v320
      %336 = vrot.lane.b32.xlu0 %v234, 102
      %v337 = vpop.permute.xlu0 %336
      %338 = vrot.lane.b32.xlu0 %v238, 102
      %v339 = vpop.permute.xlu0 %338
      %340 = vrot.lane.b32.xlu0 %v235, 102
      %v341 = vpop.permute.xlu0 %340
      %342 = vrot.lane.b32.xlu0 %v239, 102
      %v343 = vpop.permute.xlu0 %342
      %344 = vrot.lane.b32.xlu0 %v236, 102
      %v345 = vpop.permute.xlu0 %344
      %346 = vrot.lane.b32.xlu0 %v240, 102
      %v347 = vpop.permute.xlu0 %346
      %348 = vrot.lane.b32.xlu0 %v237, 102
      %v349 = vpop.permute.xlu0 %348
      %350 = vrot.lane.b32.xlu0 %v241, 102
      %v351 = vpop.permute.xlu0 %350
      %vm352 = vcmp.lt.s32.totalorder %v259, 102
      %v353 = vsel %vm352, %v345, %v349
      %v354 = vsel %vm352, %v347, %v351
      %v355 = vsel %vm352, %v341, %v345
      %v356 = vsel %vm352, %v343, %v347
      %v357 = vsel %vm352, %v337, %v341
      %v358 = vsel %vm352, %v339, %v343
      %359 = vrot.lane.b32.xlu0 %v234, 80
      %v360 = vpop.permute.xlu0 %359
      %361 = vrot.lane.b32.xlu0 %v238, 80
      %v362 = vpop.permute.xlu0 %361
      %363 = vrot.lane.b32.xlu0 %v235, 80
      %v364 = vpop.permute.xlu0 %363
      %365 = vrot.lane.b32.xlu0 %v239, 80
      %v366 = vpop.permute.xlu0 %365
      %367 = vrot.lane.b32.xlu0 %v236, 80
      %v368 = vpop.permute.xlu0 %367
      %369 = vrot.lane.b32.xlu0 %v240, 80
      %v370 = vpop.permute.xlu0 %369
      %371 = vrot.lane.b32.xlu0 %v237, 80
      %v372 = vpop.permute.xlu0 %371
      %373 = vrot.lane.b32.xlu0 %v241, 80
      %v374 = vpop.permute.xlu0 %373
      %vm375 = vcmp.lt.s32.totalorder %v259, 80
      %v376 = vsel %vm375, %v368, %v372
      %v377 = vsel %vm375, %v370, %v374
      %v378 = vsel %vm375, %v364, %v368
      %v379 = vsel %vm375, %v366, %v370
      %v380 = vsel %vm375, %v360, %v364
      %v381 = vsel %vm375, %v362, %v366
      %382 = vrot.lane.b32.xlu0 %v234, 79
      %v383 = vpop.permute.xlu0 %382
      %384 = vrot.lane.b32.xlu0 %v238, 79
      %v385 = vpop.permute.xlu0 %384
      %386 = vrot.lane.b32.xlu0 %v235, 79
      %v387 = vpop.permute.xlu0 %386
      %388 = vrot.lane.b32.xlu0 %v239, 79
      %v389 = vpop.permute.xlu0 %388
      %390 = vrot.lane.b32.xlu0 %v236, 79
      %v391 = vpop.permute.xlu0 %390
      %392 = vrot.lane.b32.xlu0 %v240, 79
      %v393 = vpop.permute.xlu0 %392
      %394 = vrot.lane.b32.xlu0 %v237, 79
      %v395 = vpop.permute.xlu0 %394
      %396 = vrot.lane.b32.xlu0 %v241, 79
      %v397 = vpop.permute.xlu0 %396
      %vm398 = vcmp.lt.s32.totalorder %v259, 79
      %v399 = vsel %vm398, %v391, %v395
      %v400 = vsel %vm398, %v393, %v397
      %v401 = vsel %vm398, %v387, %v391
      %v402 = vsel %vm398, %v389, %v393
      %v403 = vsel %vm398, %v383, %v387
      %v404 = vsel %vm398, %v385, %v389
      %405 = vrot.lane.b32.xlu0 %v234, 78
      %v406 = vpop.permute.xlu0 %405
      %407 = vrot.lane.b32.xlu0 %v238, 78
      %v408 = vpop.permute.xlu0 %407
      %409 = vrot.lane.b32.xlu0 %v235, 78
      %v410 = vpop.permute.xlu0 %409
      %411 = vrot.lane.b32.xlu0 %v239, 78
      %v412 = vpop.permute.xlu0 %411
      %413 = vrot.lane.b32.xlu0 %v236, 78
      %v414 = vpop.permute.xlu0 %413
      %415 = vrot.lane.b32.xlu0 %v240, 78
      %v416 = vpop.permute.xlu0 %415
      %417 = vrot.lane.b32.xlu0 %v237, 78
      %v418 = vpop.permute.xlu0 %417
      %419 = vrot.lane.b32.xlu0 %v241, 78
      %v420 = vpop.permute.xlu0 %419
      %vm421 = vcmp.lt.s32.totalorder %v259, 78
      %v422 = vsel %vm421, %v414, %v418
      %v423 = vsel %vm421, %v416, %v420
      %v424 = vsel %vm421, %v410, %v414
      %v425 = vsel %vm421, %v412, %v416
      %v426 = vsel %vm421, %v406, %v410
      %v427 = vsel %vm421, %v408, %v412
      %vm434 = vcmask 1041408
      %v435 = vrot.slane %v265, 6
      %v436 = vrot.slane %v263, 6
      %v437 = vrot.slane %v261, 6
      %v438 = vrot.slane %v266, 6
      %v439 = vsel %vm434, %v435, %v438
      %v440 = vrot.slane %v264, 6
      %v441 = vsel %vm434, %v436, %v440
      %v442 = vrot.slane %v262, 6
      %v443 = vsel %vm434, %v437, %v442
      %vm456 = vcmask 1043456
      %v457 = vrot.slane %v288, 4
      %v458 = vrot.slane %v286, 4
      %v459 = vrot.slane %v284, 4
      %v460 = vrot.slane %v289, 4
      %v461 = vsel %vm456, %v457, %v460
      %v462 = vrot.slane %v287, 4
      %v463 = vsel %vm456, %v458, %v462
      %v464 = vrot.slane %v285, 4
      %v465 = vsel %vm456, %v459, %v464
      %vm478 = vcmask 1045504
      %v479 = vrot.slane %v311, 2
      %v480 = vrot.slane %v309, 2
      %v481 = vrot.slane %v307, 2
      %v482 = vrot.slane %v312, 2
      %v483 = vsel %vm478, %v479, %v482
      %v484 = vrot.slane %v310, 2
      %v485 = vsel %vm478, %v480, %v484
      %v486 = vrot.slane %v308, 2
      %v487 = vsel %vm478, %v481, %v486
      %v500 = vrot.slane %v357, 6
      %v501 = vrot.slane %v355, 6
      %v502 = vrot.slane %v353, 6
      %v503 = vrot.slane %v358, 6
      %v504 = vsel %vm434, %v500, %v503
      %v505 = vrot.slane %v356, 6
      %v506 = vsel %vm434, %v501, %v505
      %v507 = vrot.slane %v354, 6
      %v508 = vsel %vm434, %v502, %v507
      %v521 = vrot.slane %v380, 4
      %v522 = vrot.slane %v378, 4
      %v523 = vrot.slane %v376, 4
      %v524 = vrot.slane %v381, 4
      %v525 = vsel %vm456, %v521, %v524
      %v526 = vrot.slane %v379, 4
      %v527 = vsel %vm456, %v522, %v526
      %v528 = vrot.slane %v377, 4
      %v529 = vsel %vm456, %v523, %v528
      %v542 = vrot.slane %v403, 2
      %v543 = vrot.slane %v401, 2
      %v544 = vrot.slane %v399, 2
      %v545 = vrot.slane %v404, 2
      %v546 = vsel %vm478, %v542, %v545
      %v547 = vrot.slane %v402, 2
      %v548 = vsel %vm478, %v543, %v547
      %v549 = vrot.slane %v400, 2
      %v550 = vsel %vm478, %v544, %v549
      %v557 = vsel %vm434, %v238, %v435
      %v558 = vsel %vm434, %v239, %v436
      %v559 = vsel %vm434, %v240, %v437
      %v560 = vsel %vm456, %v439, %v457
      %v561 = vsel %vm456, %v441, %v458
      %v562 = vsel %vm456, %v443, %v459
      %v563 = vsel %vm478, %v461, %v479
      %v564 = vsel %vm478, %v463, %v480
      %v565 = vsel %vm478, %v465, %v481
      %v566 = vsel %vm434, %v335, %v500
      %v567 = vsel %vm434, %v333, %v501
      %v568 = vsel %vm434, %v331, %v502
      %v569 = vsel %vm456, %v504, %v521
      %v570 = vsel %vm456, %v506, %v522
      %v571 = vsel %vm456, %v508, %v523
      %v572 = vsel %vm478, %v525, %v542
      %v573 = vsel %vm478, %v527, %v543
      %v574 = vsel %vm478, %v529, %v544
      %v575 = vld [vmem:[%s1] sm:$0xff]
      %v576 = vld [vmem:[%s1 + $0x8] sm:$0xff]
      %v577 = vld [vmem:[%s2] sm:$0xff]
      %v578 = vld [vmem:[%s2 + $0x8] sm:$0xff]
      %580 = vset.pattern.permute.xlu0 0
      %581 = vperm.xlu0 %580, %v577
      %v582 = vpop.permute.xlu0 %581
      %585 = vset.pattern.permute.xlu0 0
      %586 = vperm.xlu0 %585, %v578
      %v587 = vpop.permute.xlu0 %586
      %vm589 = vcmask 736256
      %v591 = vsel %vm589, %v575, 0
      %v594 = vsel %vm589, %v576, 0
      %v597 = vsel %vm434, %v427, 0
      %v600 = vsel %vm434, %v425, 0
      %v603 = vsel %vm434, %v423, 0
      %605 = vmatprep.subr.mxu0 0.0
      %606 = vmatpush1.msra.mxu0 0.0
      %607 = vmatprep.subr.mxu0 0.0
      %608 = vmatpush1.msra.mxu0 0.0
      %609 = vmatprep.subr.mxu0 0.0
      %610 = vmatpush1.msra.mxu0 0.0
      %611 = vmatprep.subr.mxu0 0.0
      %612 = vmatpush1.msra.mxu0 0.0
      %613 = vmatprep.subr.mxu0 %v600
      %614 = vmatpush1.msra.mxu0 %v597
      %615 = vmatprep.subr.mxu0 %v424
      %616 = vmatpush1.msra.mxu0 %v426
      %617 = vmatprep.subr.mxu0 %v548
      %618 = vmatpush1.msra.mxu0 %v546
      %619 = vmatprep.subr.mxu0 %v573
      %620 = vmatpush1.msra.mxu0 %v572
      %621 = vmatprep.subr.mxu0 %v570
      %622 = vmatpush1.msra.mxu0 %v569
      %623 = vmatprep.subr.mxu0 %v567
      %624 = vmatpush1.msra.mxu0 %v566
      %625 = vmatprep.subr.mxu0 %v332
      %626 = vmatpush1.msra.mxu0 %v334
      %627 = vmatprep.subr.mxu0 %v485
      %628 = vmatpush1.msra.mxu0 %v483
      %629 = vmatprep.subr.mxu0 %v564
      %630 = vmatpush1.msra.mxu0 %v563
      %631 = vmatprep.subr.mxu0 %v561
      %632 = vmatpush1.msra.mxu0 %v560
      %633 = vmatprep.subr.mxu0 %v558
      %634 = vmatpush1.msra.mxu0 %v557
      %635 = vmatprep.subr.mxu0 %v235
      %636 = vmatpush1.msra.mxu0 %v234
      %637 = vmatprep.subr.mxu0 0.0
      %638 = vmatpush2.msra.mxu0 0.0
      %639 = vmatprep.subr.mxu0 0.0
      %640 = vmatpush2.msra.mxu0 0.0
      %641 = vmatprep.subr.mxu0 0.0
      %642 = vmatpush2.msra.mxu0 0.0
      %643 = vmatprep.subr.mxu0 0.0
      %644 = vmatpush2.msra.mxu0 0.0
      %645 = vmatprep.subr.mxu0 0.0
      %646 = vmatpush2.msra.mxu0 0.0
      %647 = vmatprep.subr.mxu0 0.0
      %648 = vmatpush2.msra.mxu0 0.0
      %649 = vmatprep.subr.mxu0 0.0
      %650 = vmatpush2.msra.mxu0 0.0
      %651 = vmatprep.subr.mxu0 0.0
      %652 = vmatpush2.msra.mxu0 0.0
      %653 = vmatprep.subr.mxu0 0.0
      %654 = vmatpush2.msra.mxu0 0.0
      %655 = vmatprep.subr.mxu0 0.0
      %656 = vmatpush2.msra.mxu0 0.0
      %657 = vmatprep.subr.mxu0 0.0
      %658 = vmatpush2.msra.mxu0 0.0
      %659 = vmatprep.subr.mxu0 0.0
      %660 = vmatpush2.msra.mxu0 0.0
      %661 = vmatprep.subr.mxu0 0.0
      %662 = vmatpush2.msra.mxu0 0.0
      %663 = vmatprep.subr.mxu0 0.0
      %664 = vmatpush2.msra.mxu0 0.0
      %665 = vmatprep.subr.mxu0 0.0
      %666 = vmatpush2.msra.mxu0 0.0
      %667 = vmatprep.subr.mxu0 0.0
      %668 = vmatpush2.msra.mxu0 0.0
      %669 = vmatprep.mubr.f32.mxu0 0.0
      %670 = vmatmul.mubr.f32.gmra.mxu0 %v591
      %v671 = vpop.f32.mrf.mxu0
      %v672 = vadd.f32 %v582, %v671
      %v673 = vpop.f32.mrf.mxu0
      %v674 = vadd.f32 %v582, %v673
      %675 = vmatprep.mubr.f32.mxu0 0.0
      %676 = vmatmul.mubr.f32.gmra.mxu0 %v594
      %v677 = vpop.f32.mrf.mxu0
      %v678 = vadd.f32 %v587, %v677
      %v679 = vpop.f32.mrf.mxu0
      %v680 = vadd.f32 %v587, %v679
      %681 = vdwg.mxu0
      %682 = vmatprep.subr.mxu0 0.0
      %683 = vmatpush1.msra.mxu0 0.0
      %684 = vmatprep.subr.mxu0 0.0
      %685 = vmatpush1.msra.mxu0 0.0
      %686 = vmatprep.subr.mxu0 0.0
      %687 = vmatpush1.msra.mxu0 0.0
      %688 = vmatprep.subr.mxu0 0.0
      %689 = vmatpush1.msra.mxu0 0.0
      %690 = vmatprep.subr.mxu0 0.0
      %691 = vmatpush1.msra.mxu0 %v603
      %692 = vmatprep.subr.mxu0 0.0
      %693 = vmatpush1.msra.mxu0 %v422
      %694 = vmatprep.subr.mxu0 0.0
      %695 = vmatpush1.msra.mxu0 %v550
      %696 = vmatprep.subr.mxu0 0.0
      %697 = vmatpush1.msra.mxu0 %v574
      %698 = vmatprep.subr.mxu0 0.0
      %699 = vmatpush1.msra.mxu0 %v571
      %700 = vmatprep.subr.mxu0 0.0
      %701 = vmatpush1.msra.mxu0 %v568
      %702 = vmatprep.subr.mxu0 0.0
      %703 = vmatpush1.msra.mxu0 %v330
      %704 = vmatprep.subr.mxu0 0.0
      %705 = vmatpush1.msra.mxu0 %v487
      %706 = vmatprep.subr.mxu0 0.0
      %707 = vmatpush1.msra.mxu0 %v565
      %708 = vmatprep.subr.mxu0 0.0
      %709 = vmatpush1.msra.mxu0 %v562
      %710 = vmatprep.subr.mxu0 0.0
      %711 = vmatpush1.msra.mxu0 %v559
      %712 = vmatprep.subr.mxu0 0.0
      %713 = vmatpush1.msra.mxu0 %v236
      %714 = vmatprep.subr.mxu0 0.0
      %715 = vmatpush2.msra.mxu0 0.0
      %716 = vmatprep.subr.mxu0 0.0
      %717 = vmatpush2.msra.mxu0 0.0
      %718 = vmatprep.subr.mxu0 0.0
      %719 = vmatpush2.msra.mxu0 0.0
      %720 = vmatprep.subr.mxu0 0.0
      %721 = vmatpush2.msra.mxu0 0.0
      %722 = vmatprep.subr.mxu0 0.0
      %723 = vmatpush2.msra.mxu0 0.0
      %724 = vmatprep.subr.mxu0 0.0
      %725 = vmatpush2.msra.mxu0 0.0
      %726 = vmatprep.subr.mxu0 0.0
      %727 = vmatpush2.msra.mxu0 0.0
      %728 = vmatprep.subr.mxu0 0.0
      %729 = vmatpush2.msra.mxu0 0.0
      %730 = vmatprep.subr.mxu0 0.0
      %731 = vmatpush2.msra.mxu0 0.0
      %732 = vmatprep.subr.mxu0 0.0
      %733 = vmatpush2.msra.mxu0 0.0
      %734 = vmatprep.subr.mxu0 0.0
      %735 = vmatpush2.msra.mxu0 0.0
      %736 = vmatprep.subr.mxu0 0.0
      %737 = vmatpush2.msra.mxu0 0.0
      %738 = vmatprep.subr.mxu0 0.0
      %739 = vmatpush2.msra.mxu0 0.0
      %740 = vmatprep.subr.mxu0 0.0
      %741 = vmatpush2.msra.mxu0 0.0
      %742 = vmatprep.subr.mxu0 0.0
      %743 = vmatpush2.msra.mxu0 0.0
      %744 = vmatprep.subr.mxu0 0.0
      %745 = vmatpush2.msra.mxu0 0.0
      %746 = vmatprep.mubr.f32.mxu0 0.0
      %747 = vmatmul.mubr.f32.gmra.mxu0 %v591
      %v748 = vpop.f32.mrf.mxu0
      %v749 = vadd.f32 %v582, %v748
      %v750 = vpop.f32.mrf.mxu0
      %751 = vmatprep.mubr.f32.mxu0 0.0
      %752 = vmatmul.mubr.f32.gmra.mxu0 %v594
      %v753 = vpop.f32.mrf.mxu0
      %v754 = vadd.f32 %v587, %v753
      %v755 = vpop.f32.mrf.mxu0
      %756 = vdwg.mxu0
      %vm757 = vcmp.ge.f32.partialorder %v672, 0.0
      %vm758 = vcmp.ge.f32.partialorder %v674, 0.0
      %vm759 = vcmp.ge.f32.partialorder %v749, 0.0
      %vm760 = vcmp.ge.f32.partialorder %v678, 0.0
      %vm761 = vcmp.ge.f32.partialorder %v680, 0.0
      %vm762 = vcmp.ge.f32.partialorder %v754, 0.0
      %v763 = vld [vmem:[%s3] sm:$0xff]
      %v764 = vld [vmem:[%s3 + $0x8] sm:$0xff]
      %766 = vset.pattern.permute.xlu0 0
      %767 = vperm.xlu0 %766, %v763
      %v768 = vpop.permute.xlu0 %767
      %771 = vset.pattern.permute.xlu0 0
      %772 = vperm.xlu0 %771, %v764
      %v773 = vpop.permute.xlu0 %772
      %v775 = vmul.f32 %v768, %v672
      %v776 = vmul.f32 %v768, %v674
      %v777 = vmul.f32 %v768, %v749
      %v778 = vmul.f32 %v773, %v678
      %v779 = vmul.f32 %v773, %v680
      %v780 = vmul.f32 %v773, %v754
      %v781 = vsel %vm757, %v672, %v775
      %v782 = vsel %vm758, %v674, %v776
      %v783 = vsel %vm759, %v749, %v777
      %v784 = vsel %vm760, %v678, %v778
      %v785 = vsel %vm761, %v680, %v779
      %v786 = vsel %vm762, %v754, %v780
      %787 = vst [vmem:[%s233] sm:$0xff] %v781
      %788 = vst [vmem:[%s233 + $0x8] sm:$0xff] %v782
      %789 = vst [vmem:[%s233 + $0x10] sm:$0xff] %v783
      %790 = vst [vmem:[%s233 + $0x18] sm:$0xff] %v784
      %791 = vst [vmem:[%s233 + $0x20] sm:$0xff] %v785
      %792 = vst [vmem:[%s233 + $0x28] sm:$0xff] %v786
      %p793 = scmp.lt.s32.totalorder %s19, 1
      %s794 = scalar_select %p793, %s19, 1
      %p795 = scmp.lt.s32.totalorder %s20, 0
      %s796 = scalar_select %p795, %s20, 0
      %s797 = smul.addr %s796, 6
      %s798 = smul.addr %s794, 6
      %s799 = sadd.s32 %s797, %s798
      %s800 = smul.addr %s799, 8
      %s801 = scalar_lea.vmem %s4, %s800
      // Predicated region
      $region37: #{conv3x3_prelu_cm.1} parent=35 // pred_check
        %p802 = pneg %p138
      $region38: #{conv3x3_prelu_cm.1} parent=35 // pred_check_branch
        %804 = sbr.rel (%p802) target = $region40
      $region39: #{conv3x3_prelu_cm.1} parent=35 // pred_region
        _
      $region40: #{conv3x3_prelu_cm.1} parent=35 // pred_fallthru
        _
    $region36: #{conv3x3_prelu_cm.1} parent=5 // pred_fallthru
      _
    %p805 = scmp.le.s32.totalorder 2, %s10
    // Predicated region
    $region41: #{conv3x3_prelu_cm.1} parent=5 // pred_check
      %p806 = pneg %p805
    $region42: #{conv3x3_prelu_cm.1} parent=5 // pred_check_branch
      %808 = sbr.rel (%p806) target = $region44
    $region43: #{conv3x3_prelu_cm.1} parent=5 // pred_region
      %s809 = ssub.s32 %s10, 2
      // Predicated region
      $region45: #{conv3x3_prelu_cm.1} parent=43 // pred_check
        %p810 = pneg %p144
      $region46: #{conv3x3_prelu_cm.1} parent=43 // pred_check_branch
        %812 = sbr.rel (%p810) target = $region48
      $region47: #{conv3x3_prelu_cm.1} parent=43 // pred_region
        %p813 = scmp.lt.s32.totalorder %s21, 1
        %s814 = scalar_select %p813, %s21, 1
        %p815 = scmp.lt.s32.totalorder %s22, 0
        %s816 = scalar_select %p815, %s22, 0
        %s817 = smul.addr %s816, 6
        %s818 = smul.addr %s814, 6
        %s819 = sadd.s32 %s817, %s818
        %s820 = smul.addr %s819, 8
        %s821 = scalar_lea.vmem %s4, %s820
      $region48: #{conv3x3_prelu_cm.1} parent=43 // pred_fallthru
        _
    $region44: #{conv3x3_prelu_cm.1} parent=5 // pred_fallthru
      _
  $region6: #{conv3x3_prelu_cm.1} parent=0 // loop_footer
    %s14 = sadd.s32 1, %s10
  $region7: #{conv3x3_prelu_cm.1} parent=0 // loop_footer_branch
    %9 = sbr.rel target = $region3
  $region8: #{conv3x3_prelu_cm.1} parent=0 // loop_exit
    _

</llo_original>
